<compile_context>
chip_gen: v7x
topology: tpu7x:2x2x1
jax: 0.10.0
libtpu: 0.0.40
codegen_flags: <defaults>
</compile_context>

<pallas_src>
from functools import partial

import jax
import jax.numpy as jnp
from jax.experimental import pallas as pl
from jax.experimental.pallas import tpu as pltpu

# --- module hyper-parameters (from ElucidateDiffusion.__init__) ---
P_MU = -1.2
P_SIGMA = 1.2
SIGMA_DATA = 0.5
LOG_EPS = 1e-20

# Lane-axis tile over H*W (multiple of 128).  Working set at 8192 lanes is
# well under the default scoped-VMEM limit on all generations (incl. v7x).
MAX_TILE_HW = 8192


def _elucidated_kernel(sig_ref,        # (B,) f32 in SMEM
                       xt_ref,         # (CX, T)  x_target block
                       xc_ref,         # (CC, T)  x_conditional block
                       nz_ref,         # (CX, T)  gaussian noise block
                       w1x_ref,        # (HID, CX) backbone L1 (x_noisy part, transposed)
                       w1c_ref,        # (HID, CC) backbone L1 (conditional part, transposed)
                       w2_ref,         # (CX, HID) backbone L2 (transposed)
                       b1_ref,         # (HID, 1)
                       wt_ref,         # (HID, 1)  c_noise embedding weights
                       b2_ref,         # (CX, 1)
                       out_ref,        # (CX, T)  denoised output block
                       *, sigma_data):
    b = pl.program_id(0)
    sigma = sig_ref[b]

    sd2 = sigma_data * sigma_data
    s2 = sigma * sigma
    inv_sqrt = jax.lax.rsqrt(s2 + sd2)
    c_in = inv_sqrt                                     # (sigma^2 + sd^2)^(-1/2)
    c_skip = sd2 / (s2 + sd2)
    c_out = sigma * sigma_data * inv_sqrt
    c_noise = 0.25 * jnp.log(jnp.maximum(sigma, LOG_EPS))

    # x_noisy = x_target + sigma * noise   (elementwise, VPU, lane-dense)
    x_noisy = xt_ref[...] + sigma * nz_ref[...]         # (CX, T)

    # network_input = cat([x_noisy, x_conditional], dim=channels) * c_in
    # (the channel concat is folded into two matmuls against split weights;
    #  both K dims are MXU-padded anyway)
    xn_scaled = c_in * x_noisy                          # (CX, T)
    xc_scaled = c_in * xc_ref[...]                      # (CC, T)

    # bias + time embedding folded into a single (HID, 1) vector pre-broadcast
    bias_eff = b1_ref[...] + c_noise * wt_ref[...]      # (HID, 1)

    h = (jnp.dot(w1x_ref[...], xn_scaled, preferred_element_type=jnp.float32)
         + jnp.dot(w1c_ref[...], xc_scaled, preferred_element_type=jnp.float32)
         + bias_eff)                                    # (HID, T)
    h = jnp.maximum(h, 0.0)  # ReLU nonlinearity of the synthetic backbone

    net_out = (jnp.dot(w2_ref[...], h, preferred_element_type=jnp.float32)
               + b2_ref[...])                           # (CX, T)

    # EDM output preconditioning
    out_ref[...] = c_skip * x_noisy + c_out * net_out


def elucidated_forward(x_target_nchw, x_cond_nchw, sigmas, noise_nchw, params):
    """Pallas implementation of ElucidateDiffusion.forward (self_conditioning=False).

    Args:
      x_target_nchw: (B, 2, H, W) f32
      x_cond_nchw:   (B, CC, H, W) f32
      sigmas:        (B,) f32   -- precomputed noise_distribution samples
      noise_nchw:    (B, 2, H, W) f32 -- precomputed randn_like(x_target)
      params:        dict of backbone weights
    Returns:
      (denoised (B, 2, H, W), sigmas (B, 1, 1, 1))
    """
    B, CX, H, W = x_target_nchw.shape
    CC = x_cond_nchw.shape[1]
    HW = H * W
    HID = params["w1x"].shape[1]

    # Free reshapes (no HBM transpose): NCHW -> (B, C, H*W); channels land on
    # the sublane axis, H*W on the lane axis.
    xt = x_target_nchw.reshape(B, CX, HW)
    xc = x_cond_nchw.reshape(B, CC, HW)
    nz = noise_nchw.reshape(B, CX, HW)

    # Transposed (left-multiply) weight layout; tiny arrays, negligible cost.
    w1x_t = jnp.transpose(params["w1x"])   # (HID, CX)
    w1c_t = jnp.transpose(params["w1c"])   # (HID, CC)
    w2_t = jnp.transpose(params["w2"])     # (CX, HID)
    b1_col = jnp.transpose(params["b1"])   # (HID, 1)
    wt_col = jnp.transpose(params["wt"])   # (HID, 1)
    b2_col = jnp.transpose(params["b2"])   # (CX, 1)

    # Lane tile: full HW if it fits, otherwise a multiple-of-128 tile
    # (partial last block is handled by Pallas masking; compute is per-lane
    #  independent so pad lanes cannot contaminate valid lanes).
    t_hw = HW if HW <= MAX_TILE_HW else MAX_TILE_HW
    n_hw = pl.cdiv(HW, t_hw)

    kernel = partial(_elucidated_kernel, sigma_data=SIGMA_DATA)

    grid_spec = pltpu.PrefetchScalarGridSpec(
        num_scalar_prefetch=0,
        grid=(B, n_hw),
        in_specs=[
            pl.BlockSpec(memory_space=pltpu.MemorySpace.SMEM),        # sigmas (B,)
            pl.BlockSpec((None, CX, t_hw), lambda b, t: (b, 0, t)),   # x_target
            pl.BlockSpec((None, CC, t_hw), lambda b, t: (b, 0, t)),   # x_conditional
            pl.BlockSpec((None, CX, t_hw), lambda b, t: (b, 0, t)),   # noise
            pl.BlockSpec((HID, CX), lambda b, t: (0, 0)),             # w1x_T
            pl.BlockSpec((HID, CC), lambda b, t: (0, 0)),             # w1c_T
            pl.BlockSpec((CX, HID), lambda b, t: (0, 0)),             # w2_T
            pl.BlockSpec((HID, 1), lambda b, t: (0, 0)),              # b1
            pl.BlockSpec((HID, 1), lambda b, t: (0, 0)),              # wt
            pl.BlockSpec((CX, 1), lambda b, t: (0, 0)),               # b2
        ],
        out_specs=pl.BlockSpec((None, CX, t_hw), lambda b, t: (b, 0, t)),
    )

    denoised_rows = pl.pallas_call(
        kernel,
        out_shape=jax.ShapeDtypeStruct((B, CX, HW), jnp.float32),
        grid_spec=grid_spec,
        compiler_params=pltpu.CompilerParams(
            # Independent tiles, no cross-grid accumulator -> both axes
            # parallel (sharded across v7x's two TensorCores).
            dimension_semantics=("parallel", "parallel")),
    )(sigmas, xt, xc, nz, w1x_t, w1c_t, w2_t, b1_col, wt_col, b2_col)

    denoised = denoised_rows.reshape(B, CX, H, W)   # free reshape back to NCHW
    return denoised, sigmas.reshape(B, 1, 1, 1)


def reference_forward(x_target, x_cond, sigmas, noise, params):
    """Pure-JAX reference matching the PyTorch semantics (NCHW)."""
    s = sigmas.reshape(-1, 1, 1, 1)
    sd2 = SIGMA_DATA ** 2
    c_in = (s ** 2 + sd2) ** -0.5
    c_skip = sd2 / (s ** 2 + sd2)
    c_out = s * SIGMA_DATA * (sd2 + s ** 2) ** -0.5
    c_noise = 0.25 * jnp.log(jnp.clip(s, LOG_EPS))

    x_noisy = x_target + s * noise
    net_in = jnp.concatenate([x_noisy, x_cond], axis=1) * c_in        # (B, CX+CC, H, W)
    w1 = jnp.concatenate([params["w1x"], params["w1c"]], axis=0)      # (CX+CC, HID)
    h = jnp.einsum("bchw,cd->bdhw", net_in, w1)
    h = h + params["b1"][0].reshape(1, -1, 1, 1)
    h = h + c_noise * params["wt"][0].reshape(1, -1, 1, 1)
    h = jnp.maximum(h, 0.0)
    net_out = (jnp.einsum("bdhw,dc->bchw", h, params["w2"])
               + params["b2"][0].reshape(1, -1, 1, 1))
    denoised = c_skip * x_noisy + c_out * net_out
    return denoised, s


if __name__ == "__main__":
    B, CX, CC, H, W, HID = 2, 2, 4, 16, 16, 32

    key = jax.random.PRNGKey(0)
    k_xt, k_xc, k_sig, k_nz, k_w1, k_b1, k_wt, k_w2, k_b2 = jax.random.split(key, 9)

    x_target = jax.random.normal(k_xt, (B, CX, H, W), jnp.float32)
    x_cond = jax.random.normal(k_xc, (B, CC, H, W), jnp.float32)

    # noise_distribution(bs, p_mu, p_sigma) = exp(mu + sigma * randn(bs))
    sigmas = jnp.exp(P_MU + P_SIGMA * jax.random.normal(k_sig, (B,), jnp.float32))
    # noise = randn_like(x_target)
    noise = jax.random.normal(k_nz, (B, CX, H, W), jnp.float32)

    # deterministic synthetic backbone parameters
    w1 = 0.1 * jax.random.normal(k_w1, (CX + CC, HID), jnp.float32)
    params = {
        "w1x": w1[:CX],
        "w1c": w1[CX:],
        "b1": 0.05 * jax.random.normal(k_b1, (1, HID), jnp.float32),
        "wt": 0.1 * jax.random.normal(k_wt, (1, HID), jnp.float32),
        "w2": 0.1 * jax.random.normal(k_w2, (HID, CX), jnp.float32),
        "b2": 0.05 * jax.random.normal(k_b2, (1, CX), jnp.float32),
    }

    # TODO(synk): self_conditioning branch (random() < 0.5 recursive call) is
    # stochastic Python control flow; module default self_conditioning=False is used.
    denoised, sig_out = elucidated_forward(x_target, x_cond, sigmas, noise, params)
    jax.block_until_ready(denoised)

    ref_denoised, ref_sig = reference_forward(x_target, x_cond, sigmas, noise, params)
    assert denoised.shape == (B, CX, H, W)
    assert sig_out.shape == (B, 1, 1, 1)
    assert jnp.allclose(denoised, ref_denoised, rtol=1e-2, atol=1e-2)
    assert jnp.allclose(sig_out, ref_sig)

    print("KERNEL_OK")
</pallas_src>

<mosaic_0001>
module attributes {stable_mosaic.version = 11 : i64} {
  func.func @_elucidated_kernel(%arg0: i32, %arg1: i32, %arg2: memref<2xf32, #tpu.memory_space<smem>>, %arg3: memref<1x2x256xf32, #tpu.memory_space<vmem>>, %arg4: memref<1x4x256xf32, #tpu.memory_space<vmem>>, %arg5: memref<1x2x256xf32, #tpu.memory_space<vmem>>, %arg6: memref<32x2xf32, #tpu.memory_space<vmem>>, %arg7: memref<32x4xf32, #tpu.memory_space<vmem>>, %arg8: memref<2x32xf32, #tpu.memory_space<vmem>>, %arg9: memref<32x1xf32, #tpu.memory_space<vmem>>, %arg10: memref<32x1xf32, #tpu.memory_space<vmem>>, %arg11: memref<2x1xf32, #tpu.memory_space<vmem>>, %arg12: memref<1x2x256xf32, #tpu.memory_space<vmem>>) attributes {dimension_semantics = [#tpu.dimension_semantics<parallel>, #tpu.dimension_semantics<parallel>], iteration_bounds = array<i64: 2, 1>, scalar_prefetch = 0 : i64, scratch_operands = 0 : i64, tpu.core_type = #tpu.core_type<tc>, window_params = [{transform_indices = @transform_0, window_bounds = array<i64: 2>}, {transform_indices = @transform_1, window_bounds = array<i64: 1, 2, 256>}, {transform_indices = @transform_2, window_bounds = array<i64: 1, 4, 256>}, {transform_indices = @transform_3, window_bounds = array<i64: 1, 2, 256>}, {pipeline_mode = #tpu.pipeline_mode<synchronous>, transform_indices = @transform_4, window_bounds = array<i64: 32, 2>}, {pipeline_mode = #tpu.pipeline_mode<synchronous>, transform_indices = @transform_5, window_bounds = array<i64: 32, 4>}, {pipeline_mode = #tpu.pipeline_mode<synchronous>, transform_indices = @transform_6, window_bounds = array<i64: 2, 32>}, {pipeline_mode = #tpu.pipeline_mode<synchronous>, transform_indices = @transform_7, window_bounds = array<i64: 32, 1>}, {pipeline_mode = #tpu.pipeline_mode<synchronous>, transform_indices = @transform_8, window_bounds = array<i64: 32, 1>}, {pipeline_mode = #tpu.pipeline_mode<synchronous>, transform_indices = @transform_9, window_bounds = array<i64: 2, 1>}, {transform_indices = @transform_10, window_bounds = array<i64: 1, 2, 256>}]} {
    %0 = arith.index_cast %arg0 : i32 to index
    %1 = memref.load %arg2[%0] : memref<2xf32, #tpu.memory_space<smem>>
    %2 = arith.mulf %1, %1 : f32
    %cst = arith.constant 2.500000e-01 : f32
    %3 = arith.addf %2, %cst : f32
    %4 = math.rsqrt %3 : f32
    %cst_0 = arith.constant 2.500000e-01 : f32
    %5 = arith.addf %2, %cst_0 : f32
    %cst_1 = arith.constant 2.500000e-01 : f32
    %6 = arith.divf %cst_1, %5 : f32
    %cst_2 = arith.constant 5.000000e-01 : f32
    %7 = arith.mulf %1, %cst_2 : f32
    %8 = arith.mulf %7, %4 : f32
    %cst_3 = arith.constant 9.99999968E-21 : f32
    %9 = arith.maximumf %1, %cst_3 : f32
    %10 = math.log %9 : f32
    %cst_4 = arith.constant 2.500000e-01 : f32
    %11 = arith.mulf %cst_4, %10 : f32
    %c0 = arith.constant 0 : index
    %c0_5 = arith.constant 0 : index
    %c0_6 = arith.constant 0 : index
    %12 = vector.load %arg3[%c0, %c0_5, %c0_6] : memref<1x2x256xf32, #tpu.memory_space<vmem>>, vector<1x2x256xf32>
    %13 = vector.shape_cast %12 : vector<1x2x256xf32> to vector<2x256xf32>
    %c0_7 = arith.constant 0 : index
    %c0_8 = arith.constant 0 : index
    %c0_9 = arith.constant 0 : index
    %14 = vector.load %arg5[%c0_7, %c0_8, %c0_9] : memref<1x2x256xf32, #tpu.memory_space<vmem>>, vector<1x2x256xf32>
    %15 = vector.shape_cast %14 : vector<1x2x256xf32> to vector<2x256xf32>
    %16 = vector.broadcast %1 : f32 to vector<2x256xf32>
    %17 = arith.mulf %16, %15 : vector<2x256xf32>
    %18 = arith.addf %13, %17 : vector<2x256xf32>
    %19 = vector.broadcast %4 : f32 to vector<2x256xf32>
    %20 = arith.mulf %19, %18 : vector<2x256xf32>
    %c0_10 = arith.constant 0 : index
    %c0_11 = arith.constant 0 : index
    %c0_12 = arith.constant 0 : index
    %21 = vector.load %arg4[%c0_10, %c0_11, %c0_12] : memref<1x4x256xf32, #tpu.memory_space<vmem>>, vector<1x4x256xf32>
    %22 = vector.shape_cast %21 : vector<1x4x256xf32> to vector<4x256xf32>
    %23 = vector.broadcast %4 : f32 to vector<4x256xf32>
    %24 = arith.mulf %23, %22 : vector<4x256xf32>
    %c0_13 = arith.constant 0 : index
    %c0_14 = arith.constant 0 : index
    %25 = vector.load %arg9[%c0_13, %c0_14] : memref<32x1xf32, #tpu.memory_space<vmem>>, vector<32x1xf32>
    %c0_15 = arith.constant 0 : index
    %c0_16 = arith.constant 0 : index
    %26 = vector.load %arg10[%c0_15, %c0_16] : memref<32x1xf32, #tpu.memory_space<vmem>>, vector<32x1xf32>
    %27 = vector.broadcast %11 : f32 to vector<32x1xf32>
    %28 = arith.mulf %27, %26 : vector<32x1xf32>
    %29 = arith.addf %25, %28 : vector<32x1xf32>
    %c0_17 = arith.constant 0 : index
    %c0_18 = arith.constant 0 : index
    %30 = vector.load %arg6[%c0_17, %c0_18] : memref<32x2xf32, #tpu.memory_space<vmem>>, vector<32x2xf32>
    %cst_19 = arith.constant dense<0.000000e+00> : vector<32x256xf32>
    %31 = tpu.matmul %30, %20, %cst_19 {dimension_numbers = #tpu.dot_dimension_numbers<[1], [0], [0], [1], [0, 0, 1, 1], [], []>} : vector<32x2xf32>, vector<2x256xf32>, vector<32x256xf32> -> vector<32x256xf32>
    %c0_20 = arith.constant 0 : index
    %c0_21 = arith.constant 0 : index
    %32 = vector.load %arg7[%c0_20, %c0_21] : memref<32x4xf32, #tpu.memory_space<vmem>>, vector<32x4xf32>
    %cst_22 = arith.constant dense<0.000000e+00> : vector<32x256xf32>
    %33 = tpu.matmul %32, %24, %cst_22 {dimension_numbers = #tpu.dot_dimension_numbers<[1], [0], [0], [1], [0, 0, 1, 1], [], []>} : vector<32x4xf32>, vector<4x256xf32>, vector<32x256xf32> -> vector<32x256xf32>
    %34 = arith.addf %31, %33 : vector<32x256xf32>
    %35 = vector.broadcast %29 : vector<32x1xf32> to vector<32x256xf32>
    %36 = arith.addf %34, %35 : vector<32x256xf32>
    %cst_23 = arith.constant 0.000000e+00 : f32
    %37 = vector.broadcast %cst_23 : f32 to vector<32x256xf32>
    %38 = arith.maximumf %36, %37 : vector<32x256xf32>
    %c0_24 = arith.constant 0 : index
    %c0_25 = arith.constant 0 : index
    %39 = vector.load %arg8[%c0_24, %c0_25] : memref<2x32xf32, #tpu.memory_space<vmem>>, vector<2x32xf32>
    %cst_26 = arith.constant dense<0.000000e+00> : vector<2x256xf32>
    %40 = tpu.matmul %39, %38, %cst_26 {dimension_numbers = #tpu.dot_dimension_numbers<[1], [0], [0], [1], [0, 0, 1, 1], [], []>} : vector<2x32xf32>, vector<32x256xf32>, vector<2x256xf32> -> vector<2x256xf32>
    %c0_27 = arith.constant 0 : index
    %c0_28 = arith.constant 0 : index
    %41 = vector.load %arg11[%c0_27, %c0_28] : memref<2x1xf32, #tpu.memory_space<vmem>>, vector<2x1xf32>
    %42 = vector.broadcast %41 : vector<2x1xf32> to vector<2x256xf32>
    %43 = arith.addf %40, %42 : vector<2x256xf32>
    %44 = vector.broadcast %6 : f32 to vector<2x256xf32>
    %45 = arith.mulf %44, %18 : vector<2x256xf32>
    %46 = vector.broadcast %8 : f32 to vector<2x256xf32>
    %47 = arith.mulf %46, %43 : vector<2x256xf32>
    %48 = arith.addf %45, %47 : vector<2x256xf32>
    %c0_29 = arith.constant 0 : index
    %c0_30 = arith.constant 0 : index
    %c0_31 = arith.constant 0 : index
    %49 = vector.load %arg12[%c0_29, %c0_30, %c0_31] : memref<1x2x256xf32, #tpu.memory_space<vmem>>, vector<1x2x256xf32>
    %50 = vector.shape_cast %49 : vector<1x2x256xf32> to vector<2x256xf32>
    %51 = vector.shape_cast %48 : vector<2x256xf32> to vector<1x2x256xf32>
    tpu.vector_store %arg12[%c0_29, %c0_30, %c0_31], %51 {strides = array<i32>} : memref<1x2x256xf32, #tpu.memory_space<vmem>>, vector<1x2x256xf32>,
    return
  }
  func.func @transform_0(%arg0: i32, %arg1: i32) -> i32 {
    %c0_i32 = arith.constant 0 : i32
    %c0_i32_0 = arith.constant 0 : i32
    return %c0_i32 : i32
  }
  func.func @transform_1(%arg0: i32, %arg1: i32) -> (i32, i32, i32) {
    %c0_i32 = arith.constant 0 : i32
    %c0_i32_0 = arith.constant 0 : i32
    return %arg0, %c0_i32, %arg1 : i32, i32, i32
  }
  func.func @transform_2(%arg0: i32, %arg1: i32) -> (i32, i32, i32) {
    %c0_i32 = arith.constant 0 : i32
    %c0_i32_0 = arith.constant 0 : i32
    return %arg0, %c0_i32, %arg1 : i32, i32, i32
  }
  func.func @transform_3(%arg0: i32, %arg1: i32) -> (i32, i32, i32) {
    %c0_i32 = arith.constant 0 : i32
    %c0_i32_0 = arith.constant 0 : i32
    return %arg0, %c0_i32, %arg1 : i32, i32, i32
  }
  func.func @transform_4(%arg0: i32, %arg1: i32) -> (i32, i32) {
    %c0_i32 = arith.constant 0 : i32
    %c0_i32_0 = arith.constant 0 : i32
    %c0_i32_1 = arith.constant 0 : i32
    return %c0_i32, %c0_i32_0 : i32, i32
  }
  func.func @transform_5(%arg0: i32, %arg1: i32) -> (i32, i32) {
    %c0_i32 = arith.constant 0 : i32
    %c0_i32_0 = arith.constant 0 : i32
    %c0_i32_1 = arith.constant 0 : i32
    return %c0_i32, %c0_i32_0 : i32, i32
  }
  func.func @transform_6(%arg0: i32, %arg1: i32) -> (i32, i32) {
    %c0_i32 = arith.constant 0 : i32
    %c0_i32_0 = arith.constant 0 : i32
    %c0_i32_1 = arith.constant 0 : i32
    return %c0_i32, %c0_i32_0 : i32, i32
  }
  func.func @transform_7(%arg0: i32, %arg1: i32) -> (i32, i32) {
    %c0_i32 = arith.constant 0 : i32
    %c0_i32_0 = arith.constant 0 : i32
    %c0_i32_1 = arith.constant 0 : i32
    return %c0_i32, %c0_i32_0 : i32, i32
  }
  func.func @transform_8(%arg0: i32, %arg1: i32) -> (i32, i32) {
    %c0_i32 = arith.constant 0 : i32
    %c0_i32_0 = arith.constant 0 : i32
    %c0_i32_1 = arith.constant 0 : i32
    return %c0_i32, %c0_i32_0 : i32, i32
  }
  func.func @transform_9(%arg0: i32, %arg1: i32) -> (i32, i32) {
    %c0_i32 = arith.constant 0 : i32
    %c0_i32_0 = arith.constant 0 : i32
    %c0_i32_1 = arith.constant 0 : i32
    return %c0_i32, %c0_i32_0 : i32, i32
  }
  func.func @transform_10(%arg0: i32, %arg1: i32) -> (i32, i32, i32) {
    %c0_i32 = arith.constant 0 : i32
    %c0_i32_0 = arith.constant 0 : i32
    return %arg0, %c0_i32, %arg1 : i32, i32, i32
  }
}

</mosaic_0001>

<llo_original>
// kernel: tpu_custom_call.1
$region0: #{tpu_custom_call.1}
  #allocation0 [shape = 'u32[]', space=smem, size = 0x4, offset = 0x4, fixed_abs, tag = 'smem constant byte address 0x4 - core index']
  #allocation1 [shape = 'u32[144,128]{1,0:T(1,128)}', space=vmem, size = 0x12000, scoped, tag = 'internal scratch']
  %s0 = inlined_call_operand.vmem [shape: f32[2], index: 0, kind: input, shape index: {}]
  %s1 = inlined_call_operand.vmem [shape: f32[2,2,256], index: 1, kind: input, shape index: {}]
  %s2 = inlined_call_operand.vmem [shape: f32[2,4,256], index: 2, kind: input, shape index: {}]
  %s3 = inlined_call_operand.vmem [shape: f32[2,2,256], index: 3, kind: input, shape index: {}]
  %s4 = inlined_call_operand.vmem [shape: f32[32,2], index: 4, kind: input, shape index: {}]
  %s5 = inlined_call_operand.vmem [shape: f32[32,4], index: 5, kind: input, shape index: {}]
  %s6 = inlined_call_operand.vmem [shape: f32[2,32], index: 6, kind: input, shape index: {}]
  %s7 = inlined_call_operand.vmem [shape: f32[32,1], index: 7, kind: input, shape index: {}]
  %s8 = inlined_call_operand.vmem [shape: f32[32,1], index: 8, kind: input, shape index: {}]
  %s9 = inlined_call_operand.vmem [shape: f32[2,1], index: 9, kind: input, shape index: {}]
  %s10 = inlined_call_operand.hbm [shape: f32[2,2,256], index: 10, kind: output, shape index: {}]
  %s11 = sld [smem:[#allocation0]]
  $region77: #{tpu_custom_call.1} parent=0
    _
  %s13 = ssub.s32 1, %s11
  %s14 = scalar_select 0, %s13, %s11
  $region1: #{tpu_custom_call.1} parent=0
    #allocation2 [shape = 'u8[512]{0}', space=smem, size = 0x200, scoped, tag = 'input window, operand 0, single buffered']
    #allocation3 [shape = 's32[2]{0}', space=sflag, size = 0x8, scoped, tag = 'scoped memory for tpu_custom_call.1']
    #allocation4 [shape = 's32[2]{0}', space=sflag, size = 0x8, scoped, tag = 'scoped memory for tpu_custom_call.1']
    #allocation5 [shape = 'u8[4096]{0}', space=vmem, size = 0x1000, scoped, tag = 'output window, operand 0']
    %15 = vsyncpa [#allocation4], 0
    %16 = vsyncpa [#allocation3], 0
    %s17 = scalar_lea.sflag [#allocation3], 1
    %18 = vsyncpa %s17, 0
    loop: start=0, step=1, limit=4
    $region2: #{tpu_custom_call.1} parent=1 // loop_pre_header
      _
    $region3: #{tpu_custom_call.1} parent=1 // loop_header
      %s20 = sphi 0, %s24
      %p21 = scmp.ge.s32.totalorder %s20, 4
      %s27 = sphi 0, %s39
      %s28 = sphi 0, %s35
      %s29 = sphi 0, %s27
      %s30 = sphi 0, %s28
      %s31 = sphi 0, %s29
      %s32 = sphi 0, %s30
      %s40 = sphi 0, %s40
      %s42 = sphi 0, %s40
      %s43 = sphi 0, %s42
      %s57 = sphi 0, %s43
      %s65 = sphi 0, %s67
      %s68 = sphi 0, %s65
      %s69 = sphi 0, %s68
      %s85 = sphi 0, %s69
      %s93 = sphi 0, %s95
      %s96 = sphi 0, %s93
      %s97 = sphi 0, %s96
      %s113 = sphi 0, %s97
      %s121 = sphi 0, %s123
      %s124 = sphi 0, %s121
      %s125 = sphi 0, %s124
      %s141 = sphi 0, %s125
      %s145 = sphi 0, %s145
      %s147 = sphi 0, %s145
      %s148 = sphi 0, %s147
      %s162 = sphi 0, %s148
      %s166 = sphi 0, %s166
      %s168 = sphi 0, %s166
      %s169 = sphi 0, %s168
      %s183 = sphi 0, %s169
      %s187 = sphi 0, %s187
      %s189 = sphi 0, %s187
      %s190 = sphi 0, %s189
      %s204 = sphi 0, %s190
      %s208 = sphi 0, %s208
      %s210 = sphi 0, %s208
      %s211 = sphi 0, %s210
      %s225 = sphi 0, %s211
      %s229 = sphi 0, %s229
      %s231 = sphi 0, %s229
      %s232 = sphi 0, %s231
      %s246 = sphi 0, %s232
      %s250 = sphi 0, %s250
      %s252 = sphi 0, %s250
      %s253 = sphi 0, %s252
      %s267 = sphi 0, %s253
      %s275 = sphi 0, %s277
      %s278 = sphi 0, %s275
      %s279 = sphi 0, %s278
      %s295 = sphi 0, %s279
    $region4: #{tpu_custom_call.1} parent=1 // loop_header_branch
      %23 = sbr.rel (%p21) target = $region8
    $region5: #{tpu_custom_call.1} parent=1 // loop_body
      %s25 = ssub.s32 %s20, 1
      %s26 = ssub.s32 %s20, 2
      %s33 = sadd.s32 1, %s28
      %p34 = scmp.ge.s32.totalorder %s33, 1
      %s35 = scalar_select %p34, 0, %s33
      %s36 = sadd.s32 1, %s27
      %s37 = scalar_select %p34, %s36, %s27
      %p38 = scmp.ge.s32.totalorder %s37, 2
      %s39 = scalar_select %p38, 0, %s37
      %s41 = sadd.s32 %s40, 1
      %p44 = scmp.eq.s32.totalorder %s20, 1
      %p45 = scmp.ne.s32.totalorder %s40, %s42
      %p46 = scmp.eq.s32.totalorder %s20, 0
      %p47 = por %p45, %p46
      %p48 = scmp.ne.s32.totalorder %s40, %s42
      %p49 = scmp.eq.s32.totalorder %s25, 1
      %p50 = por %p48, %p49
      %p51 = scmp.ne.s32.totalorder %s42, %s43
      %p52 = scmp.eq.s32.totalorder %s25, 0
      %p53 = por %p51, %p52
      %p54 = scmp.ne.s32.totalorder %s42, %s43
      %p55 = scmp.eq.s32.totalorder %s26, 1
      %p56 = por %p54, %p55
      %p58 = scmp.ne.s32.totalorder %s43, %s57
      %p59 = scmp.eq.s32.totalorder %s26, 0
      %p60 = por %p58, %p59
      %s61 = ssub.s32 %s27, %s39
      %s62 = ssub.s32 %s28, %s35
      %s63 = sor.u32 %s61, %s62
      %p64 = scmp.eq.s32.totalorder %s63, 0
      %s66 = sadd.s32 %s65, 1
      %s67 = scalar_select %p64, %s65, %s66
      %p70 = pneg %p64
      %p71 = scmp.eq.s32.totalorder %s20, 1
      %p72 = por %p70, %p71
      %p73 = scmp.ne.s32.totalorder %s65, %s68
      %p74 = scmp.eq.s32.totalorder %s20, 0
      %p75 = por %p73, %p74
      %p76 = scmp.ne.s32.totalorder %s65, %s68
      %p77 = scmp.eq.s32.totalorder %s25, 1
      %p78 = por %p76, %p77
      %p79 = scmp.ne.s32.totalorder %s68, %s69
      %p80 = scmp.eq.s32.totalorder %s25, 0
      %p81 = por %p79, %p80
      %p82 = scmp.ne.s32.totalorder %s68, %s69
      %p83 = scmp.eq.s32.totalorder %s26, 1
      %p84 = por %p82, %p83
      %p86 = scmp.ne.s32.totalorder %s69, %s85
      %p87 = scmp.eq.s32.totalorder %s26, 0
      %p88 = por %p86, %p87
      %s89 = ssub.s32 %s27, %s39
      %s90 = ssub.s32 %s28, %s35
      %s91 = sor.u32 %s89, %s90
      %p92 = scmp.eq.s32.totalorder %s91, 0
      %s94 = sadd.s32 %s93, 1
      %s95 = scalar_select %p92, %s93, %s94
      %p98 = pneg %p92
      %p99 = scmp.eq.s32.totalorder %s20, 1
      %p100 = por %p98, %p99
      %p101 = scmp.ne.s32.totalorder %s93, %s96
      %p102 = scmp.eq.s32.totalorder %s20, 0
      %p103 = por %p101, %p102
      %p104 = scmp.ne.s32.totalorder %s93, %s96
      %p105 = scmp.eq.s32.totalorder %s25, 1
      %p106 = por %p104, %p105
      %p107 = scmp.ne.s32.totalorder %s96, %s97
      %p108 = scmp.eq.s32.totalorder %s25, 0
      %p109 = por %p107, %p108
      %p110 = scmp.ne.s32.totalorder %s96, %s97
      %p111 = scmp.eq.s32.totalorder %s26, 1
      %p112 = por %p110, %p111
      %p114 = scmp.ne.s32.totalorder %s97, %s113
      %p115 = scmp.eq.s32.totalorder %s26, 0
      %p116 = por %p114, %p115
      %s117 = ssub.s32 %s27, %s39
      %s118 = ssub.s32 %s28, %s35
      %s119 = sor.u32 %s117, %s118
      %p120 = scmp.eq.s32.totalorder %s119, 0
      %s122 = sadd.s32 %s121, 1
      %s123 = scalar_select %p120, %s121, %s122
      %p126 = pneg %p120
      %p127 = scmp.eq.s32.totalorder %s20, 1
      %p128 = por %p126, %p127
      %p129 = scmp.ne.s32.totalorder %s121, %s124
      %p130 = scmp.eq.s32.totalorder %s20, 0
      %p131 = por %p129, %p130
      %p132 = scmp.ne.s32.totalorder %s121, %s124
      %p133 = scmp.eq.s32.totalorder %s25, 1
      %p134 = por %p132, %p133
      %p135 = scmp.ne.s32.totalorder %s124, %s125
      %p136 = scmp.eq.s32.totalorder %s25, 0
      %p137 = por %p135, %p136
      %p138 = scmp.ne.s32.totalorder %s124, %s125
      %p139 = scmp.eq.s32.totalorder %s26, 1
      %p140 = por %p138, %p139
      %p142 = scmp.ne.s32.totalorder %s125, %s141
      %p143 = scmp.eq.s32.totalorder %s26, 0
      %p144 = por %p142, %p143
      %s146 = sadd.s32 %s145, 1
      %p149 = scmp.eq.s32.totalorder %s20, 1
      %p150 = scmp.ne.s32.totalorder %s145, %s147
      %p151 = scmp.eq.s32.totalorder %s20, 0
      %p152 = por %p150, %p151
      %p153 = scmp.ne.s32.totalorder %s145, %s147
      %p154 = scmp.eq.s32.totalorder %s25, 1
      %p155 = por %p153, %p154
      %p156 = scmp.ne.s32.totalorder %s147, %s148
      %p157 = scmp.eq.s32.totalorder %s25, 0
      %p158 = por %p156, %p157
      %p159 = scmp.ne.s32.totalorder %s147, %s148
      %p160 = scmp.eq.s32.totalorder %s26, 1
      %p161 = por %p159, %p160
      %p163 = scmp.ne.s32.totalorder %s148, %s162
      %p164 = scmp.eq.s32.totalorder %s26, 0
      %p165 = por %p163, %p164
      %s167 = sadd.s32 %s166, 1
      %p170 = scmp.eq.s32.totalorder %s20, 1
      %p171 = scmp.ne.s32.totalorder %s166, %s168
      %p172 = scmp.eq.s32.totalorder %s20, 0
      %p173 = por %p171, %p172
      %p174 = scmp.ne.s32.totalorder %s166, %s168
      %p175 = scmp.eq.s32.totalorder %s25, 1
      %p176 = por %p174, %p175
      %p177 = scmp.ne.s32.totalorder %s168, %s169
      %p178 = scmp.eq.s32.totalorder %s25, 0
      %p179 = por %p177, %p178
      %p180 = scmp.ne.s32.totalorder %s168, %s169
      %p181 = scmp.eq.s32.totalorder %s26, 1
      %p182 = por %p180, %p181
      %p184 = scmp.ne.s32.totalorder %s169, %s183
      %p185 = scmp.eq.s32.totalorder %s26, 0
      %p186 = por %p184, %p185
      %s188 = sadd.s32 %s187, 1
      %p191 = scmp.eq.s32.totalorder %s20, 1
      %p192 = scmp.ne.s32.totalorder %s187, %s189
      %p193 = scmp.eq.s32.totalorder %s20, 0
      %p194 = por %p192, %p193
      %p195 = scmp.ne.s32.totalorder %s187, %s189
      %p196 = scmp.eq.s32.totalorder %s25, 1
      %p197 = por %p195, %p196
      %p198 = scmp.ne.s32.totalorder %s189, %s190
      %p199 = scmp.eq.s32.totalorder %s25, 0
      %p200 = por %p198, %p199
      %p201 = scmp.ne.s32.totalorder %s189, %s190
      %p202 = scmp.eq.s32.totalorder %s26, 1
      %p203 = por %p201, %p202
      %p205 = scmp.ne.s32.totalorder %s190, %s204
      %p206 = scmp.eq.s32.totalorder %s26, 0
      %p207 = por %p205, %p206
      %s209 = sadd.s32 %s208, 1
      %p212 = scmp.eq.s32.totalorder %s20, 1
      %p213 = scmp.ne.s32.totalorder %s208, %s210
      %p214 = scmp.eq.s32.totalorder %s20, 0
      %p215 = por %p213, %p214
      %p216 = scmp.ne.s32.totalorder %s208, %s210
      %p217 = scmp.eq.s32.totalorder %s25, 1
      %p218 = por %p216, %p217
      %p219 = scmp.ne.s32.totalorder %s210, %s211
      %p220 = scmp.eq.s32.totalorder %s25, 0
      %p221 = por %p219, %p220
      %p222 = scmp.ne.s32.totalorder %s210, %s211
      %p223 = scmp.eq.s32.totalorder %s26, 1
      %p224 = por %p222, %p223
      %p226 = scmp.ne.s32.totalorder %s211, %s225
      %p227 = scmp.eq.s32.totalorder %s26, 0
      %p228 = por %p226, %p227
      %s230 = sadd.s32 %s229, 1
      %p233 = scmp.eq.s32.totalorder %s20, 1
      %p234 = scmp.ne.s32.totalorder %s229, %s231
      %p235 = scmp.eq.s32.totalorder %s20, 0
      %p236 = por %p234, %p235
      %p237 = scmp.ne.s32.totalorder %s229, %s231
      %p238 = scmp.eq.s32.totalorder %s25, 1
      %p239 = por %p237, %p238
      %p240 = scmp.ne.s32.totalorder %s231, %s232
      %p241 = scmp.eq.s32.totalorder %s25, 0
      %p242 = por %p240, %p241
      %p243 = scmp.ne.s32.totalorder %s231, %s232
      %p244 = scmp.eq.s32.totalorder %s26, 1
      %p245 = por %p243, %p244
      %p247 = scmp.ne.s32.totalorder %s232, %s246
      %p248 = scmp.eq.s32.totalorder %s26, 0
      %p249 = por %p247, %p248
      %s251 = sadd.s32 %s250, 1
      %p254 = scmp.eq.s32.totalorder %s20, 1
      %p255 = scmp.ne.s32.totalorder %s250, %s252
      %p256 = scmp.eq.s32.totalorder %s20, 0
      %p257 = por %p255, %p256
      %p258 = scmp.ne.s32.totalorder %s250, %s252
      %p259 = scmp.eq.s32.totalorder %s25, 1
      %p260 = por %p258, %p259
      %p261 = scmp.ne.s32.totalorder %s252, %s253
      %p262 = scmp.eq.s32.totalorder %s25, 0
      %p263 = por %p261, %p262
      %p264 = scmp.ne.s32.totalorder %s252, %s253
      %p265 = scmp.eq.s32.totalorder %s26, 1
      %p266 = por %p264, %p265
      %p268 = scmp.ne.s32.totalorder %s253, %s267
      %p269 = scmp.eq.s32.totalorder %s26, 0
      %p270 = por %p268, %p269
      %s271 = ssub.s32 %s27, %s39
      %s272 = ssub.s32 %s28, %s35
      %s273 = sor.u32 %s271, %s272
      %p274 = scmp.eq.s32.totalorder %s273, 0
      %s276 = sadd.s32 %s275, 1
      %s277 = scalar_select %p274, %s275, %s276
      %p280 = pneg %p274
      %p281 = scmp.eq.s32.totalorder %s20, 1
      %p282 = por %p280, %p281
      %p283 = scmp.ne.s32.totalorder %s275, %s278
      %p284 = scmp.eq.s32.totalorder %s20, 0
      %p285 = por %p283, %p284
      %p286 = scmp.ne.s32.totalorder %s275, %s278
      %p287 = scmp.eq.s32.totalorder %s25, 1
      %p288 = por %p286, %p287
      %p289 = scmp.ne.s32.totalorder %s278, %s279
      %p290 = scmp.eq.s32.totalorder %s25, 0
      %p291 = por %p289, %p290
      %p292 = scmp.ne.s32.totalorder %s278, %s279
      %p293 = scmp.eq.s32.totalorder %s26, 1
      %p294 = por %p292, %p293
      %p296 = scmp.ne.s32.totalorder %s279, %s295
      %p297 = scmp.eq.s32.totalorder %s26, 0
      %p298 = por %p296, %p297
      %p299 = scmp.le.s32.totalorder 1, %s20
      %p300 = scmp.lt.s32.totalorder %s20, 3
      %p301 = pnand %p299, %p300
      %p302 = pneg %p301
      // Predicated region
      $region9: #{tpu_custom_call.1} parent=5 // pred_check
        _
      $region10: #{tpu_custom_call.1} parent=5 // pred_check_branch
        %304 = sbr.rel (%p301) target = $region12
      $region11: #{tpu_custom_call.1} parent=5 // pred_region
        %s305 = ssub.s32 %s20, 1
        // Predicated region
        $region13: #{tpu_custom_call.1} parent=11 // pred_check
          %p306 = pneg %p53
        $region14: #{tpu_custom_call.1} parent=11 // pred_check_branch
          %308 = sbr.rel (%p306) target = $region16
        $region15: #{tpu_custom_call.1} parent=11 // pred_region
          %s310 = ssub.s32 16, 16
          %311 = vsyncadd [#allocation4], %s310
          %s313 = sshll.u32 %s0, 4
          %s314 = int_to_ptr.vmem [resolvable:$true] %s313
          %316 = dma.vmem_to_smem %s314, 16, [#allocation2], [#allocation4]
        $region16: #{tpu_custom_call.1} parent=11 // pred_fallthru
          _
        // Predicated region
        $region17: #{tpu_custom_call.1} parent=11 // pred_check
          %p317 = pneg %p158
        $region18: #{tpu_custom_call.1} parent=11 // pred_check_branch
          %319 = sbr.rel (%p317) target = $region20
        $region19: #{tpu_custom_call.1} parent=11 // pred_region
          _
        $region20: #{tpu_custom_call.1} parent=11 // pred_fallthru
          _
        // Predicated region
        $region21: #{tpu_custom_call.1} parent=11 // pred_check
          %p320 = pneg %p179
        $region22: #{tpu_custom_call.1} parent=11 // pred_check_branch
          %322 = sbr.rel (%p320) target = $region24
        $region23: #{tpu_custom_call.1} parent=11 // pred_region
          _
        $region24: #{tpu_custom_call.1} parent=11 // pred_fallthru
          _
        // Predicated region
        $region25: #{tpu_custom_call.1} parent=11 // pred_check
          %p323 = pneg %p200
        $region26: #{tpu_custom_call.1} parent=11 // pred_check_branch
          %325 = sbr.rel (%p323) target = $region28
        $region27: #{tpu_custom_call.1} parent=11 // pred_region
          _
        $region28: #{tpu_custom_call.1} parent=11 // pred_fallthru
          _
        // Predicated region
        $region29: #{tpu_custom_call.1} parent=11 // pred_check
          %p326 = pneg %p221
        $region30: #{tpu_custom_call.1} parent=11 // pred_check_branch
          %328 = sbr.rel (%p326) target = $region32
        $region31: #{tpu_custom_call.1} parent=11 // pred_region
          _
        $region32: #{tpu_custom_call.1} parent=11 // pred_fallthru
          _
        // Predicated region
        $region33: #{tpu_custom_call.1} parent=11 // pred_check
          %p329 = pneg %p242
        $region34: #{tpu_custom_call.1} parent=11 // pred_check_branch
          %331 = sbr.rel (%p329) target = $region36
        $region35: #{tpu_custom_call.1} parent=11 // pred_region
          _
        $region36: #{tpu_custom_call.1} parent=11 // pred_fallthru
          _
        // Predicated region
        $region37: #{tpu_custom_call.1} parent=11 // pred_check
          %p332 = pneg %p263
        $region38: #{tpu_custom_call.1} parent=11 // pred_check_branch
          %334 = sbr.rel (%p332) target = $region40
        $region39: #{tpu_custom_call.1} parent=11 // pred_region
          _
        $region40: #{tpu_custom_call.1} parent=11 // pred_fallthru
          _
      $region12: #{tpu_custom_call.1} parent=5 // pred_fallthru
        _
      %p335 = scmp.lt.s32.totalorder %s20, 2
      // Predicated region
      $region41: #{tpu_custom_call.1} parent=5 // pred_check
        %p336 = pneg %p335
      $region42: #{tpu_custom_call.1} parent=5 // pred_check_branch
        %338 = sbr.rel (%p336) target = $region44
      $region43: #{tpu_custom_call.1} parent=5 // pred_region
        // Predicated region
        $region45: #{tpu_custom_call.1} parent=43 // pred_check
          %p339 = pneg %p75
        $region46: #{tpu_custom_call.1} parent=43 // pred_check_branch
          %341 = sbr.rel (%p339) target = $region48
        $region47: #{tpu_custom_call.1} parent=43 // pred_region
          %s342 = smul.u32 2, %s28
          %p343 = scmp.lt.s32.totalorder %s27, 1
          %s344 = scalar_select %p343, %s27, 1
          %p345 = scmp.lt.s32.totalorder %s342, 1
          %s346 = scalar_select %p345, %s342, 1
          %s347 = smul.addr %s344, 2
          %s348 = sadd.s32 %s346, %s347
          %s349 = smul.addr %s348, 2
          %s350 = scalar_lea.vmem %s1, %s349
          %s351 = smul.u32 2, %s28
        $region48: #{tpu_custom_call.1} parent=43 // pred_fallthru
          _
        // Predicated region
        $region49: #{tpu_custom_call.1} parent=43 // pred_check
          %p352 = pneg %p103
        $region50: #{tpu_custom_call.1} parent=43 // pred_check_branch
          %354 = sbr.rel (%p352) target = $region52
        $region51: #{tpu_custom_call.1} parent=43 // pred_region
          %s355 = smul.u32 2, %s28
          %p356 = scmp.lt.s32.totalorder %s27, 1
          %s357 = scalar_select %p356, %s27, 1
          %p358 = scmp.lt.s32.totalorder %s355, 1
          %s359 = scalar_select %p358, %s355, 1
          %s360 = smul.addr %s357, 2
          %s361 = sadd.s32 %s359, %s360
          %s362 = smul.addr %s361, 4
          %s363 = scalar_lea.vmem %s2, %s362
          %s364 = smul.u32 2, %s28
        $region52: #{tpu_custom_call.1} parent=43 // pred_fallthru
          _
        // Predicated region
        $region53: #{tpu_custom_call.1} parent=43 // pred_check
          %p365 = pneg %p131
        $region54: #{tpu_custom_call.1} parent=43 // pred_check_branch
          %367 = sbr.rel (%p365) target = $region56
        $region55: #{tpu_custom_call.1} parent=43 // pred_region
          %s368 = smul.u32 2, %s28
          %p369 = scmp.lt.s32.totalorder %s27, 1
          %s370 = scalar_select %p369, %s27, 1
          %p371 = scmp.lt.s32.totalorder %s368, 1
          %s372 = scalar_select %p371, %s368, 1
          %s373 = smul.addr %s370, 2
          %s374 = sadd.s32 %s372, %s373
          %s375 = smul.addr %s374, 2
          %s376 = scalar_lea.vmem %s3, %s375
          %s377 = smul.u32 2, %s28
        $region56: #{tpu_custom_call.1} parent=43 // pred_fallthru
          _
      $region44: #{tpu_custom_call.1} parent=5 // pred_fallthru
        _
      %p378 = scmp.le.s32.totalorder 1, %s20
      %p379 = scmp.lt.s32.totalorder %s20, 3
      %p380 = pnand %p378, %p379
      %p381 = pneg %p380
      // Predicated region
      $region57: #{tpu_custom_call.1} parent=5 // pred_check
        _
      $region58: #{tpu_custom_call.1} parent=5 // pred_check_branch
        %383 = sbr.rel (%p380) target = $region60
      $region59: #{tpu_custom_call.1} parent=5 // pred_region
        %s384 = ssub.s32 %s20, 1
        // Predicated region
        $region61: #{tpu_custom_call.1} parent=59 // pred_check
          %p385 = pneg %p53
        $region62: #{tpu_custom_call.1} parent=59 // pred_check_branch
          %387 = sbr.rel (%p385) target = $region64
        $region63: #{tpu_custom_call.1} parent=59 // pred_region
          %388 = dma.done [#allocation4], 16
        $region64: #{tpu_custom_call.1} parent=59 // pred_fallthru
          _
        %389 = sfence
        %p390 = pneg %p53
        %p391 = pneg %p50
        %s392 = smul.u32 2, %s30
        %p393 = scmp.lt.s32.totalorder %s29, 1
        %s394 = scalar_select %p393, %s29, 1
        %p395 = scmp.lt.s32.totalorder %s392, 1
        %s396 = scalar_select %p395, %s392, 1
        %s397 = smul.addr %s394, 2
        %s398 = sadd.s32 %s396, %s397
        %s399 = smul.addr %s398, 2
        %s400 = scalar_lea.vmem %s1, %s399
        %p401 = pneg %p81
        %p402 = pneg %p78
        %s403 = smul.u32 2, %s30
        %p404 = scmp.lt.s32.totalorder %s29, 1
        %s405 = scalar_select %p404, %s29, 1
        %p406 = scmp.lt.s32.totalorder %s403, 1
        %s407 = scalar_select %p406, %s403, 1
        %s408 = smul.addr %s405, 2
        %s409 = sadd.s32 %s407, %s408
        %s410 = smul.addr %s409, 4
        %s411 = scalar_lea.vmem %s2, %s410
        %p412 = pneg %p109
        %p413 = pneg %p106
        %s414 = smul.u32 2, %s30
        %p415 = scmp.lt.s32.totalorder %s29, 1
        %s416 = scalar_select %p415, %s29, 1
        %p417 = scmp.lt.s32.totalorder %s414, 1
        %s418 = scalar_select %p417, %s414, 1
        %s419 = smul.addr %s416, 2
        %s420 = sadd.s32 %s418, %s419
        %s421 = smul.addr %s420, 2
        %s422 = scalar_lea.vmem %s3, %s421
        %p423 = pneg %p137
        %p424 = pneg %p134
        %p425 = pneg %p158
        %p426 = pneg %p155
        %p427 = pneg %p179
        %p428 = pneg %p176
        %p429 = pneg %p200
        %p430 = pneg %p197
        %p431 = pneg %p221
        %p432 = pneg %p218
        %p433 = pneg %p242
        %p434 = pneg %p239
        %p435 = pneg %p263
        %p436 = pneg %p260
        %p437 = pneg %p291
        %p438 = pneg %p288
        %s439 = sand.u32 %s278, 1
        %s440 = scalar_lea.sflag [#allocation3], %s439
        %s441 = sand.u32 %s278, 1
        %s442 = smul.addr %s441, 4
        %s443 = scalar_lea.vmem [#allocation5], %s442
        %s444 = smul.u32 2, %s30
        %p445 = scmp.lt.s32.totalorder %s29, 1
        %s446 = scalar_select %p445, %s29, 1
        %p447 = scmp.lt.s32.totalorder %s444, 1
        %s448 = scalar_select %p447, %s444, 1
        %s449 = smul.addr %s446, 2
        %s450 = sadd.s32 %s448, %s449
        %s451 = smul.addr %s450, 2
        %s452 = scalar_lea.vmem %s1, %s451
        %s453 = smul.u32 2, %s30
        %s454 = smul.u32 2, %s30
        %p455 = scmp.lt.s32.totalorder %s29, 1
        %s456 = scalar_select %p455, %s29, 1
        %p457 = scmp.lt.s32.totalorder %s454, 1
        %s458 = scalar_select %p457, %s454, 1
        %s459 = smul.addr %s456, 2
        %s460 = sadd.s32 %s458, %s459
        %s461 = smul.addr %s460, 4
        %s462 = scalar_lea.vmem %s2, %s461
        %s463 = smul.u32 2, %s30
        %s464 = smul.u32 2, %s30
        %p465 = scmp.lt.s32.totalorder %s29, 1
        %s466 = scalar_select %p465, %s29, 1
        %p467 = scmp.lt.s32.totalorder %s464, 1
        %s468 = scalar_select %p467, %s464, 1
        %s469 = smul.addr %s466, 2
        %s470 = sadd.s32 %s468, %s469
        %s471 = smul.addr %s470, 2
        %s472 = scalar_lea.vmem %s3, %s471
        %s473 = smul.u32 2, %s30
        %s474 = smul.u32 2, %s30
        %s475 = sld [smem:[#allocation2 + %s29]]
        %s476 = smul.f32 %s475, %s475
        %s477 = sadd.f32 %s476, 0.25
        %v478 = vstv %s477
        %v479 = vrsqrt.pop %v478
        %s480 = vtos %v479
        %v481 = vstv %s477
        %v482 = vrcp.pop %v481
        %s483 = vtos %v482
        %s484 = smul.f32 0.25, %s483
        %s485 = smul.f32 %s475, 0.5
        %s486 = smul.f32 %s485, %s480
        %s487 = smax.f32 %s475, 1e-20
        %v488 = vstv %s487
        %v489 = vlog2.pop %v488
        %v490 = vmul.f32 %v489, 0.6931472
        %s491 = vtos %v490
        %s492 = smul.f32 %s491, 0.25
        %v493 = vld [vmem:[%s452] sm:$0xf]
        %v494 = vld [vmem:[%s472] sm:$0xf]
        %v495 = vstv %s475
        %v496 = vmul.f32 %v495, %v494
        %v497 = vadd.f32 %v493, %v496
        %v498 = vstv %s480
        %v499 = vmul.f32 %v498, %v497
        %v500 = vld [vmem:[%s462] sm:$0xff]
        %v501 = vmul.f32 %v498, %v500
        %v502 = vld [vmem:[%s7] sm:$0xff]
        %v503 = vld [vmem:[%s7 + $0x8] sm:$0xff]
        %v504 = vld [vmem:[%s7 + $0x10] sm:$0xff]
        %v505 = vld [vmem:[%s7 + $0x18] sm:$0xff]
        %v506 = vld [vmem:[%s8] sm:$0xff]
        %v507 = vld [vmem:[%s8 + $0x8] sm:$0xff]
        %v508 = vld [vmem:[%s8 + $0x10] sm:$0xff]
        %v509 = vld [vmem:[%s8 + $0x18] sm:$0xff]
        %v510 = vstv %s492
        %v511 = vmul.f32 %v510, %v506
        %v512 = vmul.f32 %v510, %v507
        %v513 = vmul.f32 %v510, %v508
        %v514 = vmul.f32 %v510, %v509
        %v515 = vadd.f32 %v502, %v511
        %v516 = vadd.f32 %v503, %v512
        %v517 = vadd.f32 %v504, %v513
        %v518 = vadd.f32 %v505, %v514
        %v519 = vld [vmem:[%s4] sm:$0xff]
        %v520 = vld [vmem:[%s4 + $0x8] sm:$0xff]
        %v521 = vld [vmem:[%s4 + $0x10] sm:$0xff]
        %v522 = vld [vmem:[%s4 + $0x18] sm:$0xff]
        %v523 = vld [vmem:[%s5] sm:$0xff]
        %v524 = vld [vmem:[%s5 + $0x8] sm:$0xff]
        %v525 = vld [vmem:[%s5 + $0x10] sm:$0xff]
        %v526 = vld [vmem:[%s5 + $0x18] sm:$0xff]
        %v528 = vcombine.high %v501, %v501
        %vm529 = vcmask 31744
        %v531 = vsel %vm529, %v523, 0
        %v534 = vsel %vm529, %v524, 0
        %v537 = vsel %vm529, %v525, 0
        %v540 = vsel %vm529, %v526, 0
        %vm542 = vcmask 1043456
        %v543 = vsel %vm542, %v501, 0
        %v545 = vsel %vm542, %v528, 0
        %547 = vmatprep.subr.mxu0 %v545
        %548 = vmatpush1.msra.mxu0 %v543
        %549 = vmatprep.subr.mxu0 0.0
        %550 = vmatpush1.msra.mxu0 0.0
        %551 = vmatprep.subr.mxu0 0.0
        %552 = vmatpush1.msra.mxu0 0.0
        %553 = vmatprep.subr.mxu0 0.0
        %554 = vmatpush1.msra.mxu0 0.0
        %555 = vmatprep.subr.mxu0 0.0
        %556 = vmatpush1.msra.mxu0 0.0
        %557 = vmatprep.subr.mxu0 0.0
        %558 = vmatpush1.msra.mxu0 0.0
        %559 = vmatprep.subr.mxu0 0.0
        %560 = vmatpush1.msra.mxu0 0.0
        %561 = vmatprep.subr.mxu0 0.0
        %562 = vmatpush1.msra.mxu0 0.0
        %563 = vmatprep.subr.mxu0 0.0
        %564 = vmatpush1.msra.mxu0 0.0
        %565 = vmatprep.subr.mxu0 0.0
        %566 = vmatpush1.msra.mxu0 0.0
        %567 = vmatprep.subr.mxu0 0.0
        %568 = vmatpush1.msra.mxu0 0.0
        %569 = vmatprep.subr.mxu0 0.0
        %570 = vmatpush1.msra.mxu0 0.0
        %571 = vmatprep.subr.mxu0 0.0
        %572 = vmatpush1.msra.mxu0 0.0
        %573 = vmatprep.subr.mxu0 0.0
        %574 = vmatpush1.msra.mxu0 0.0
        %575 = vmatprep.subr.mxu0 0.0
        %576 = vmatpush1.msra.mxu0 0.0
        %577 = vmatprep.subr.mxu0 0.0
        %578 = vmatpush1.msra.mxu0 0.0
        %579 = vmatprep.subr.mxu0 0.0
        %580 = vmatpush1.msra.mxu0 0.0
        %581 = vmatprep.subr.mxu0 0.0
        %582 = vmatpush1.msra.mxu0 0.0
        %583 = vmatprep.subr.mxu0 0.0
        %584 = vmatpush1.msra.mxu0 0.0
        %585 = vmatprep.subr.mxu0 0.0
        %586 = vmatpush1.msra.mxu0 0.0
        %587 = vmatprep.subr.mxu0 0.0
        %588 = vmatpush1.msra.mxu0 0.0
        %589 = vmatprep.subr.mxu0 0.0
        %590 = vmatpush1.msra.mxu0 0.0
        %591 = vmatprep.subr.mxu0 0.0
        %592 = vmatpush1.msra.mxu0 0.0
        %593 = vmatprep.subr.mxu0 0.0
        %594 = vmatpush1.msra.mxu0 0.0
        %595 = vmatprep.subr.mxu0 0.0
        %596 = vmatpush1.msra.mxu0 0.0
        %597 = vmatprep.subr.mxu0 0.0
        %598 = vmatpush1.msra.mxu0 0.0
        %599 = vmatprep.subr.mxu0 0.0
        %600 = vmatpush1.msra.mxu0 0.0
        %601 = vmatprep.subr.mxu0 0.0
        %602 = vmatpush1.msra.mxu0 0.0
        %603 = vmatprep.subr.mxu0 0.0
        %604 = vmatpush1.msra.mxu0 0.0
        %605 = vmatprep.subr.mxu0 0.0
        %606 = vmatpush1.msra.mxu0 0.0
        %607 = vmatprep.subr.mxu0 0.0
        %608 = vmatpush1.msra.mxu0 0.0
        %609 = vmatprep.subr.mxu0 0.0
        %610 = vmatpush1.msra.mxu0 0.0
        %611 = vmatprep.mubr.f32.mxu0 0.0
        %612 = vmatmul.mubr.f32.gmra.mrb[0].mxu0 %v531
        %v613 = vpop.f32.mrb[0].mxu0
        %v614 = vadd.f32 0.0, %v613
        %v615 = vpop.f32.mrb[0].mxu0
        %v616 = vadd.f32 0.0, %v615
        %617 = vmatprep.mubr.f32.mxu0 0.0
        %618 = vmatmul.mubr.f32.gmra.mrb[0].mxu0 %v534
        %v619 = vpop.f32.mrb[0].mxu0
        %v620 = vadd.f32 0.0, %v619
        %v621 = vpop.f32.mrb[0].mxu0
        %v622 = vadd.f32 0.0, %v621
        %623 = vmatprep.mubr.f32.mxu0 0.0
        %624 = vmatmul.mubr.f32.gmra.mrb[0].mxu0 %v537
        %v625 = vpop.f32.mrb[0].mxu0
        %v626 = vadd.f32 0.0, %v625
        %v627 = vpop.f32.mrb[0].mxu0
        %v628 = vadd.f32 0.0, %v627
        %629 = vmatprep.mubr.f32.mxu0 0.0
        %630 = vmatmul.mubr.f32.gmra.mrb[0].mxu0 %v540
        %v631 = vpop.f32.mrb[0].mxu0
        %v632 = vadd.f32 0.0, %v631
        %v633 = vpop.f32.mrb[0].mxu0
        %v634 = vadd.f32 0.0, %v633
        %635 = vdwg.mxu0
        %v638 = vunpack.c.l.s4 1983009808
        %v639 = vunpack.c.0.s8 %v638
        %v640 = vlaneseq
        %v641 = vshrl.u32 %v640, 7
        %v642 = vsub.s32 %v639, %v641
        %v643 = vrot.slane %v499, %v642
        %v644 = vcombine.high %v643, %v643
        %vm645 = vcmask 15360
        %v647 = vsel %vm645, %v519, 0
        %v650 = vsel %vm645, %v520, 0
        %v653 = vsel %vm645, %v521, 0
        %v656 = vsel %vm645, %v522, 0
        %vm658 = vcmask 1041408
        %v659 = vsel %vm658, %v643, 0
        %v661 = vsel %vm658, %v644, 0
        %663 = vmatprep.subr.mxu0 %v661
        %664 = vmatpush1.msra.mxu0 %v659
        %665 = vmatprep.subr.mxu0 0.0
        %666 = vmatpush1.msra.mxu0 0.0
        %667 = vmatprep.subr.mxu0 0.0
        %668 = vmatpush1.msra.mxu0 0.0
        %669 = vmatprep.subr.mxu0 0.0
        %670 = vmatpush1.msra.mxu0 0.0
        %671 = vmatprep.subr.mxu0 0.0
        %672 = vmatpush1.msra.mxu0 0.0
        %673 = vmatprep.subr.mxu0 0.0
        %674 = vmatpush1.msra.mxu0 0.0
        %675 = vmatprep.subr.mxu0 0.0
        %676 = vmatpush1.msra.mxu0 0.0
        %677 = vmatprep.subr.mxu0 0.0
        %678 = vmatpush1.msra.mxu0 0.0
        %679 = vmatprep.subr.mxu0 0.0
        %680 = vmatpush1.msra.mxu0 0.0
        %681 = vmatprep.subr.mxu0 0.0
        %682 = vmatpush1.msra.mxu0 0.0
        %683 = vmatprep.subr.mxu0 0.0
        %684 = vmatpush1.msra.mxu0 0.0
        %685 = vmatprep.subr.mxu0 0.0
        %686 = vmatpush1.msra.mxu0 0.0
        %687 = vmatprep.subr.mxu0 0.0
        %688 = vmatpush1.msra.mxu0 0.0
        %689 = vmatprep.subr.mxu0 0.0
        %690 = vmatpush1.msra.mxu0 0.0
        %691 = vmatprep.subr.mxu0 0.0
        %692 = vmatpush1.msra.mxu0 0.0
        %693 = vmatprep.subr.mxu0 0.0
        %694 = vmatpush1.msra.mxu0 0.0
        %695 = vmatprep.subr.mxu0 0.0
        %696 = vmatpush1.msra.mxu0 0.0
        %697 = vmatprep.subr.mxu0 0.0
        %698 = vmatpush1.msra.mxu0 0.0
        %699 = vmatprep.subr.mxu0 0.0
        %700 = vmatpush1.msra.mxu0 0.0
        %701 = vmatprep.subr.mxu0 0.0
        %702 = vmatpush1.msra.mxu0 0.0
        %703 = vmatprep.subr.mxu0 0.0
        %704 = vmatpush1.msra.mxu0 0.0
        %705 = vmatprep.subr.mxu0 0.0
        %706 = vmatpush1.msra.mxu0 0.0
        %707 = vmatprep.subr.mxu0 0.0
        %708 = vmatpush1.msra.mxu0 0.0
        %709 = vmatprep.subr.mxu0 0.0
        %710 = vmatpush1.msra.mxu0 0.0
        %711 = vmatprep.subr.mxu0 0.0
        %712 = vmatpush1.msra.mxu0 0.0
        %713 = vmatprep.subr.mxu0 0.0
        %714 = vmatpush1.msra.mxu0 0.0
        %715 = vmatprep.subr.mxu0 0.0
        %716 = vmatpush1.msra.mxu0 0.0
        %717 = vmatprep.subr.mxu0 0.0
        %718 = vmatpush1.msra.mxu0 0.0
        %719 = vmatprep.subr.mxu0 0.0
        %720 = vmatpush1.msra.mxu0 0.0
        %721 = vmatprep.subr.mxu0 0.0
        %722 = vmatpush1.msra.mxu0 0.0
        %723 = vmatprep.subr.mxu0 0.0
        %724 = vmatpush1.msra.mxu0 0.0
        %725 = vmatprep.subr.mxu0 0.0
        %726 = vmatpush1.msra.mxu0 0.0
        %727 = vmatprep.mubr.f32.mxu0 0.0
        %728 = vmatmul.mubr.f32.gmra.mrb[0].mxu0 %v647
        %v729 = vpop.f32.mrb[0].mxu0
        %v730 = vadd.f32 %v614, %v729
        %v731 = vpop.f32.mrb[0].mxu0
        %v732 = vadd.f32 %v616, %v731
        %733 = vmatprep.mubr.f32.mxu0 0.0
        %734 = vmatmul.mubr.f32.gmra.mrb[0].mxu0 %v650
        %v735 = vpop.f32.mrb[0].mxu0
        %v736 = vadd.f32 %v620, %v735
        %v737 = vpop.f32.mrb[0].mxu0
        %v738 = vadd.f32 %v622, %v737
        %739 = vmatprep.mubr.f32.mxu0 0.0
        %740 = vmatmul.mubr.f32.gmra.mrb[0].mxu0 %v653
        %v741 = vpop.f32.mrb[0].mxu0
        %v742 = vadd.f32 %v626, %v741
        %v743 = vpop.f32.mrb[0].mxu0
        %v744 = vadd.f32 %v628, %v743
        %745 = vmatprep.mubr.f32.mxu0 0.0
        %746 = vmatmul.mubr.f32.gmra.mrb[0].mxu0 %v656
        %v747 = vpop.f32.mrb[0].mxu0
        %v748 = vadd.f32 %v632, %v747
        %v749 = vpop.f32.mrb[0].mxu0
        %v750 = vadd.f32 %v634, %v749
        %751 = vdwg.mxu0
        %753 = vset.pattern.permute.xlu0 0
        %754 = vperm.xlu0 %753, %v515
        %v755 = vpop.permute.xlu0 %754
        %758 = vset.pattern.permute.xlu0 0
        %759 = vperm.xlu0 %758, %v516
        %v760 = vpop.permute.xlu0 %759
        %763 = vset.pattern.permute.xlu0 0
        %764 = vperm.xlu0 %763, %v517
        %v765 = vpop.permute.xlu0 %764
        %768 = vset.pattern.permute.xlu0 0
        %769 = vperm.xlu0 %768, %v518
        %v770 = vpop.permute.xlu0 %769
        %v772 = vadd.f32 %v730, %v755
        %v773 = vadd.f32 %v732, %v755
        %v774 = vadd.f32 %v736, %v760
        %v775 = vadd.f32 %v738, %v760
        %v776 = vadd.f32 %v742, %v765
        %v777 = vadd.f32 %v744, %v765
        %v778 = vadd.f32 %v748, %v770
        %v779 = vadd.f32 %v750, %v770
        %v780 = vmax.f32 %v772, 0.0
        %v781 = vmax.f32 %v773, 0.0
        %v782 = vmax.f32 %v774, 0.0
        %v783 = vmax.f32 %v775, 0.0
        %v784 = vmax.f32 %v776, 0.0
        %v785 = vmax.f32 %v777, 0.0
        %v786 = vmax.f32 %v778, 0.0
        %v787 = vmax.f32 %v779, 0.0
        %v788 = vld [vmem:[%s6] sm:$0x3]
        %v789 = vld [vmem:[%s9] sm:$0x3]
        %791 = vset.pattern.permute.xlu0 0
        %792 = vperm.xlu0 %791, %v789
        %v793 = vpop.permute.xlu0 %792
        %vm795 = vcmask 261120
        %v797 = vsel %vm795, %v788, 0
        %799 = vmatprep.subr.mxu0 %v781
        %800 = vmatpush1.msra.mxu0 %v780
        %801 = vmatprep.subr.mxu0 %v783
        %802 = vmatpush1.msra.mxu0 %v782
        %803 = vmatprep.subr.mxu0 %v785
        %804 = vmatpush1.msra.mxu0 %v784
        %805 = vmatprep.subr.mxu0 %v787
        %806 = vmatpush1.msra.mxu0 %v786
        %807 = vmatprep.subr.mxu0 0.0
        %808 = vmatpush1.msra.mxu0 0.0
        %809 = vmatprep.subr.mxu0 0.0
        %810 = vmatpush1.msra.mxu0 0.0
        %811 = vmatprep.subr.mxu0 0.0
        %812 = vmatpush1.msra.mxu0 0.0
        %813 = vmatprep.subr.mxu0 0.0
        %814 = vmatpush1.msra.mxu0 0.0
        %815 = vmatprep.subr.mxu0 0.0
        %816 = vmatpush1.msra.mxu0 0.0
        %817 = vmatprep.subr.mxu0 0.0
        %818 = vmatpush1.msra.mxu0 0.0
        %819 = vmatprep.subr.mxu0 0.0
        %820 = vmatpush1.msra.mxu0 0.0
        %821 = vmatprep.subr.mxu0 0.0
        %822 = vmatpush1.msra.mxu0 0.0
        %823 = vmatprep.subr.mxu0 0.0
        %824 = vmatpush1.msra.mxu0 0.0
        %825 = vmatprep.subr.mxu0 0.0
        %826 = vmatpush1.msra.mxu0 0.0
        %827 = vmatprep.subr.mxu0 0.0
        %828 = vmatpush1.msra.mxu0 0.0
        %829 = vmatprep.subr.mxu0 0.0
        %830 = vmatpush1.msra.mxu0 0.0
        %831 = vmatprep.subr.mxu0 0.0
        %832 = vmatpush1.msra.mxu0 0.0
        %833 = vmatprep.subr.mxu0 0.0
        %834 = vmatpush1.msra.mxu0 0.0
        %835 = vmatprep.subr.mxu0 0.0
        %836 = vmatpush1.msra.mxu0 0.0
        %837 = vmatprep.subr.mxu0 0.0
        %838 = vmatpush1.msra.mxu0 0.0
        %839 = vmatprep.subr.mxu0 0.0
        %840 = vmatpush1.msra.mxu0 0.0
        %841 = vmatprep.subr.mxu0 0.0
        %842 = vmatpush1.msra.mxu0 0.0
        %843 = vmatprep.subr.mxu0 0.0
        %844 = vmatpush1.msra.mxu0 0.0
        %845 = vmatprep.subr.mxu0 0.0
        %846 = vmatpush1.msra.mxu0 0.0
        %847 = vmatprep.subr.mxu0 0.0
        %848 = vmatpush1.msra.mxu0 0.0
        %849 = vmatprep.subr.mxu0 0.0
        %850 = vmatpush1.msra.mxu0 0.0
        %851 = vmatprep.subr.mxu0 0.0
        %852 = vmatpush1.msra.mxu0 0.0
        %853 = vmatprep.subr.mxu0 0.0
        %854 = vmatpush1.msra.mxu0 0.0
        %855 = vmatprep.subr.mxu0 0.0
        %856 = vmatpush1.msra.mxu0 0.0
        %857 = vmatprep.subr.mxu0 0.0
        %858 = vmatpush1.msra.mxu0 0.0
        %859 = vmatprep.subr.mxu0 0.0
        %860 = vmatpush1.msra.mxu0 0.0
        %861 = vmatprep.subr.mxu0 0.0
        %862 = vmatpush1.msra.mxu0 0.0
        %863 = vmatprep.mubr.f32.mxu0 0.0
        %864 = vmatmul.mubr.f32.gmra.mrb[0].mxu0 %v797
        %v865 = vpop.f32.mrb[0].mxu0
        %v866 = vadd.f32 %v793, %v865
        %v867 = vpop.f32.mrb[0].mxu0
        %v868 = vadd.f32 %v793, %v867
        %869 = vdwg.mxu0
        %v870 = vstv %s484
        %v871 = vmul.f32 %v870, %v497
        %v872 = vstv %s486
        %v873 = vmul.f32 %v872, %v866
        %v874 = vmul.f32 %v872, %v868
        %v877 = vcombine.low %v873, %v874
        %v879 = vunpack.c.l.s4 1983009808
        %v880 = vunpack.c.0.s8 %v879
        %v881 = vlaneseq
        %v882 = vshrl.u32 %v881, 7
        %v883 = vsub.s32 %v880, %v882
        %v884 = vrot.slane %v877, %v883
        %v886 = vadd.f32 %v871, %v884
        %887 = vst [vmem:[%s443] sm:$0xf] %v886
        %s888 = sand.u32 %s278, 1
        %s889 = scalar_lea.sflag [#allocation3], %s888
        %s890 = sand.u32 %s278, 1
        %s891 = smul.addr %s890, 4
        %s892 = scalar_lea.vmem [#allocation5], %s891
        // Predicated region
        $region65: #{tpu_custom_call.1} parent=59 // pred_check
          %p893 = pneg %p288
        $region66: #{tpu_custom_call.1} parent=59 // pred_check_branch
          %895 = sbr.rel (%p893) target = $region68
        $region67: #{tpu_custom_call.1} parent=59 // pred_region
          %s896 = smul.u32 2, %s30
          %s898 = ssub.s32 64, 64
          %899 = vsyncadd %s889, %s898
          %s900 = smul.addr %s29, 2
          %s901 = sadd.s32 %s896, %s900
          %s902 = smul.addr %s901, 32
          %s903 = scalar_lea.hbm %s10, %s902
          %s905 = sshll.u32 %s892, 4
          %s906 = int_to_ptr.vmem [resolvable:$true] %s905
          %908 = dma.vmem_to_hbm [thread:$0]  %s906, 64, %s903, %s889
        $region68: #{tpu_custom_call.1} parent=59 // pred_fallthru
          _
      $region60: #{tpu_custom_call.1} parent=5 // pred_fallthru
        _
      %p909 = scmp.le.s32.totalorder 2, %s20
      // Predicated region
      $region69: #{tpu_custom_call.1} parent=5 // pred_check
        %p910 = pneg %p909
      $region70: #{tpu_custom_call.1} parent=5 // pred_check_branch
        %912 = sbr.rel (%p910) target = $region72
      $region71: #{tpu_custom_call.1} parent=5 // pred_region
        %s913 = ssub.s32 %s20, 2
        // Predicated region
        $region73: #{tpu_custom_call.1} parent=71 // pred_check
          %p914 = pneg %p294
        $region74: #{tpu_custom_call.1} parent=71 // pred_check_branch
          %916 = sbr.rel (%p914) target = $region76
        $region75: #{tpu_custom_call.1} parent=71 // pred_region
          %s917 = sand.u32 %s279, 1
          %s918 = scalar_lea.sflag [#allocation3], %s917
          %s919 = sand.u32 %s279, 1
          %s920 = smul.addr %s919, 4
          %s921 = scalar_lea.vmem [#allocation5], %s920
          %922 = dma.done %s918, 64
        $region76: #{tpu_custom_call.1} parent=71 // pred_fallthru
          _
      $region72: #{tpu_custom_call.1} parent=5 // pred_fallthru
        _
    $region6: #{tpu_custom_call.1} parent=1 // loop_footer
      %s24 = sadd.s32 1, %s20
    $region7: #{tpu_custom_call.1} parent=1 // loop_footer_branch
      %19 = sbr.rel target = $region3
    $region8: #{tpu_custom_call.1} parent=1 // loop_exit
      _
    %923 = vsyncpa [#allocation3], 1
    %s924 = scalar_lea.sflag [#allocation3], 1
    %925 = vsyncpa %s924, 1
    %926 = vsyncpa [#allocation4], 1
    %s927 = scalar_lea.sflag [#allocation4], 1
    %928 = vsyncpa %s927, 1

</llo_original>
